<compile_context>
chip_gen: v7x
topology: tpu7x:2x2x1
jax: 0.10.0
libtpu: 0.0.40
codegen_flags: <defaults>
</compile_context>

<pallas_src>
from functools import partial

import jax
import jax.numpy as jnp
from jax.experimental import pallas as pl
from jax.experimental.pallas import tpu as pltpu


LANE = 128      # lane width (last dim)
SUBLANE = 8     # fp32 sublane width (second-to-last dim)


def _round_up(x, m):
    return (x + m - 1) // m * m


def _pick_batch_tile(bp, max_tile=512):
    """Sublane-aligned batch tile, capped at max_tile, with >=2 grid steps
    whenever bp >= 16 so megacore (v7x) can shard the batch axis."""
    if bp <= SUBLANE:
        return bp
    half = _round_up((bp + 1) // 2, SUBLANE)
    return min(max_tile, half)


# ----------------------------- Pallas kernel ---------------------------------
def _fused_mlp_kernel(
    x_ref,
    w0, b0, w1, b1, w2, b2, w3, b3, w4, b4, w5, b5, w6, b6,   # 7x Linear+ReLU
    wh, bh,                                                   # stacked task heads
    o_ref,
):
    """Whole MLP chain in VMEM: 7x (bf16 matmul + f32 bias + ReLU) ->
    heads matmul -> exact f32 sigmoid on the narrow head columns."""
    h = x_ref[...]                                             # [tb, in] f32
    for w, b in ((w0, b0), (w1, b1), (w2, b2), (w3, b3),
                 (w4, b4), (w5, b5), (w6, b6)):
        h = jnp.dot(h.astype(jnp.bfloat16), w[...],
                    preferred_element_type=jnp.float32) + b[...]
        h = jnp.maximum(h, 0.0)
    y = jnp.dot(h.astype(jnp.bfloat16), wh[...],
                preferred_element_type=jnp.float32) + bh[...]  # [tb, 4*out]
    o_ref[...] = (1.0 / (1.0 + jnp.exp(-y))).astype(o_ref.dtype)


def _fused_mlp(x, weights, biases, *, batch_tile):
    """x: [bp, input_size] f32 (bp multiple of 8).  Returns [bp, 4*output_size]."""
    bp, in_size = x.shape
    head_out = weights[-1].shape[1]
    grid = (pl.cdiv(bp, batch_tile),)          # ragged last block handled by Pallas

    # Activations: batch-tiled, full (narrow) feature dim -> no lane inflation.
    in_specs = [pl.BlockSpec((batch_tile, in_size), lambda i: (i, 0))]
    flat_params = []
    for w, b in zip(weights, biases):
        # Whole-array blocks, constant index_map -> fetched once, VMEM-resident.
        in_specs.append(pl.BlockSpec(w.shape, lambda i: (0, 0)))
        in_specs.append(pl.BlockSpec(b.shape, lambda i: (0, 0)))
        flat_params.extend((w, b))

    return pl.pallas_call(
        _fused_mlp_kernel,
        out_shape=jax.ShapeDtypeStruct((bp, head_out), jnp.float32),
        grid=grid,
        in_specs=in_specs,
        out_specs=pl.BlockSpec((batch_tile, head_out), lambda i: (i, 0)),
        compiler_params=pltpu.CompilerParams(
            dimension_semantics=("parallel",),   # shard batch tiles across TCs
        ),
    )(x, *flat_params)


# ----------------------------- parameter init --------------------------------
def _orthogonal(key, in_dim, out_dim):
    """Mirrors torch.nn.init.orthogonal_ on the (out, in) matrix; returns (in, out)."""
    a = jax.random.normal(key, (out_dim, in_dim), dtype=jnp.float32)
    if out_dim < in_dim:
        q, r = jnp.linalg.qr(a.T)
        q = q.T
    else:
        q, r = jnp.linalg.qr(a)
    d = jnp.sign(jnp.diagonal(r))
    d = jnp.where(d == 0, 1.0, d)
    q = q * (d[:, None] if out_dim < in_dim else d[None, :])
    return q.T                                     # (in, out): y = x @ W


def _kaiming_uniform(key, in_dim, out_dim):
    """Default torch.nn.Linear weight init (kaiming_uniform_, a=sqrt(5))."""
    bound = 1.0 / float(in_dim) ** 0.5
    w_pt = jax.random.uniform(key, (out_dim, in_dim), minval=-bound, maxval=bound)
    return w_pt.T


def init_params(key, config):
    """Returns kernel-ready params: bf16 weights, f32 biases, exact zero padding."""
    input_size = config["input_size"]
    emb_size = config["emb_size"]
    hidden_size = config["hidden_size"]
    output_size = config["output_size"]

    keys = jax.random.split(key, 12)

    raw = []  # (w [in, out], b [out]) in forward order
    # embeds[0]: nn.Linear default init (kaiming_uniform weight, uniform bias)
    bound0 = 1.0 / float(input_size) ** 0.5
    raw.append((_kaiming_uniform(keys[0], input_size, emb_size),
                jax.random.uniform(keys[1], (emb_size,), minval=-bound0,
                                   maxval=bound0, dtype=jnp.float32)))
    # embeds[2]: OrthoLinear (orthogonal weight, zero bias)
    raw.append((_orthogonal(keys[2], emb_size, hidden_size),
                jnp.zeros((hidden_size,), jnp.float32)))
    # linearlayers: hidden -> 256 -> 128 -> 64 -> 32 -> 32 (all OrthoLinear+ReLU)
    dims = [hidden_size, 256, 128, 64, 32, 32]
    for i in range(5):
        raw.append((_orthogonal(keys[3 + i], dims[i], dims[i + 1]),
                    jnp.zeros((dims[i + 1],), jnp.float32)))
    # 4 task heads stacked along the output axis: [32, 4*output_size]
    head_w = jnp.concatenate(
        [_orthogonal(keys[8 + t], 32, output_size) for t in range(4)], axis=1)
    raw.append((head_w, jnp.zeros((4 * output_size,), jnp.float32)))

    weights, biases = [], []
    n_layers = len(raw)
    for li, (w, b) in enumerate(raw):
        in_dim, out_dim = w.shape
        # First layer keeps its real (narrow) input dim (x fed unpadded, MXU pads K).
        ip = in_dim if li == 0 else _round_up(in_dim, LANE)
        # Head keeps its real (narrow) output dim -> narrow HBM output.
        op = out_dim if li == n_layers - 1 else _round_up(out_dim, LANE)
        w_pad = jnp.pad(w, ((0, ip - in_dim), (0, op - out_dim)))
        weights.append(w_pad.astype(jnp.bfloat16))             # bf16 MXU inputs
        biases.append(jnp.pad(b, (0, op - out_dim)).reshape(1, op)
                      .astype(jnp.float32))

    return {
        "weights": tuple(weights),
        "biases": tuple(biases),
        "input_size": input_size,
        "output_size": output_size,
    }


# ------------------------------- forward -------------------------------------
@partial(jax.jit, static_argnames=("task_id", "output_size", "max_batch_tile"))
def _forward_impl(weights, biases, x, task_id, output_size, max_batch_tile):
    b_real = x.shape[0]
    bp = _round_up(max(b_real, 1), SUBLANE)
    if bp != b_real:
        # Only the batch axis is padded (<=7 rows, 64 B each) -- no lane inflation.
        x = jnp.pad(x, ((0, bp - b_real), (0, 0)))
    tb = _pick_batch_tile(bp, max_batch_tile)
    out_all = _fused_mlp(x, weights, biases, batch_tile=tb)   # [bp, 4*output_size]
    start = task_id * output_size
    return out_all[:b_real, start:start + output_size]        # fuses under jit


def nn_model_forward(params, x, task_id, *, max_batch_tile=512):
    """Mirror of NNModel.forward: x [B, input_size] -> sigmoid(head(MLP(x)))."""
    if task_id not in (0, 1, 2, 3):
        assert False, "Bad Task ID passed"
    assert x.shape[1] == params["input_size"]
    return _forward_impl(params["weights"], params["biases"], x,
                         task_id, params["output_size"], max_batch_tile)


def _reference_forward(params, x, task_id):
    """Pure-JAX reference using the same bf16 weights / f32 accumulation."""
    h = x
    for w, b in zip(params["weights"][:-1], params["biases"][:-1]):
        h = jnp.dot(h.astype(jnp.bfloat16), w,
                    preferred_element_type=jnp.float32) + b
        h = jnp.maximum(h, 0.0)
    y = jnp.dot(h.astype(jnp.bfloat16), params["weights"][-1],
                preferred_element_type=jnp.float32) + params["biases"][-1]
    s = jax.nn.sigmoid(y)
    start = task_id * params["output_size"]
    return s[:, start:start + params["output_size"]]


# --------------------------------- main ---------------------------------------
if __name__ == "__main__":
    config = {
        "input_size": 16,
        "emb_size": 32,
        "hidden_size": 32,
        "output_size": 4,
    }
    key = jax.random.PRNGKey(0)
    pkey, xkey, xkey2 = jax.random.split(key, 3)
    params = init_params(pkey, config)

    # Small batch (B=2): single grid step.
    batch = 2
    x = jax.random.normal(xkey, (batch, config["input_size"]), dtype=jnp.float32)
    out = jax.block_until_ready(nn_model_forward(params, x, task_id=0))
    assert out.shape == (batch, config["output_size"])
    assert bool(jnp.all((out >= 0.0) & (out <= 1.0)))
    ref = _reference_forward(params, x, task_id=0)
    assert bool(jnp.allclose(out, ref, atol=2e-3)), "mismatch vs JAX reference"

    # Another head reuses the same compiled kernel (slice changes only).
    out3 = jax.block_until_ready(nn_model_forward(params, x, task_id=3))
    assert out3.shape == (batch, config["output_size"])
    ref3 = _reference_forward(params, x, task_id=3)
    assert bool(jnp.allclose(out3, ref3, atol=2e-3)), "mismatch vs JAX reference"

    # Larger, non-aligned batch (B=50): exercises batch padding to 56 rows,
    # 2 grid steps and a ragged last block.
    batch2 = 50
    x2 = jax.random.normal(xkey2, (batch2, config["input_size"]), dtype=jnp.float32)
    out_big = jax.block_until_ready(nn_model_forward(params, x2, task_id=2))
    assert out_big.shape == (batch2, config["output_size"])
    ref_big = _reference_forward(params, x2, task_id=2)
    assert bool(jnp.allclose(out_big, ref_big, atol=2e-3)), "mismatch vs JAX reference"

    print("KERNEL_OK")
</pallas_src>

<mosaic_0001>
module attributes {stable_mosaic.version = 11 : i64} {
  func.func @_fused_mlp_kernel(%arg0: i32, %arg1: memref<8x16xf32, #tpu.memory_space<vmem>>, %arg2: memref<16x128xbf16, #tpu.memory_space<vmem>>, %arg3: memref<1x128xf32, #tpu.memory_space<vmem>>, %arg4: memref<128x128xbf16, #tpu.memory_space<vmem>>, %arg5: memref<1x128xf32, #tpu.memory_space<vmem>>, %arg6: memref<128x256xbf16, #tpu.memory_space<vmem>>, %arg7: memref<1x256xf32, #tpu.memory_space<vmem>>, %arg8: memref<256x128xbf16, #tpu.memory_space<vmem>>, %arg9: memref<1x128xf32, #tpu.memory_space<vmem>>, %arg10: memref<128x128xbf16, #tpu.memory_space<vmem>>, %arg11: memref<1x128xf32, #tpu.memory_space<vmem>>, %arg12: memref<128x128xbf16, #tpu.memory_space<vmem>>, %arg13: memref<1x128xf32, #tpu.memory_space<vmem>>, %arg14: memref<128x128xbf16, #tpu.memory_space<vmem>>, %arg15: memref<1x128xf32, #tpu.memory_space<vmem>>, %arg16: memref<128x16xbf16, #tpu.memory_space<vmem>>, %arg17: memref<1x16xf32, #tpu.memory_space<vmem>>, %arg18: memref<8x16xf32, #tpu.memory_space<vmem>>) attributes {dimension_semantics = [#tpu.dimension_semantics<parallel>], iteration_bounds = array<i64: 1>, scalar_prefetch = 0 : i64, scratch_operands = 0 : i64, tpu.core_type = #tpu.core_type<tc>, window_params = [{transform_indices = @transform_0, window_bounds = array<i64: 8, 16>}, {pipeline_mode = #tpu.pipeline_mode<synchronous>, transform_indices = @transform_1, window_bounds = array<i64: 16, 128>}, {pipeline_mode = #tpu.pipeline_mode<synchronous>, transform_indices = @transform_2, window_bounds = array<i64: 1, 128>}, {pipeline_mode = #tpu.pipeline_mode<synchronous>, transform_indices = @transform_3, window_bounds = array<i64: 128, 128>}, {pipeline_mode = #tpu.pipeline_mode<synchronous>, transform_indices = @transform_4, window_bounds = array<i64: 1, 128>}, {pipeline_mode = #tpu.pipeline_mode<synchronous>, transform_indices = @transform_5, window_bounds = array<i64: 128, 256>}, {pipeline_mode = #tpu.pipeline_mode<synchronous>, transform_indices = @transform_6, window_bounds = array<i64: 1, 256>}, {pipeline_mode = #tpu.pipeline_mode<synchronous>, transform_indices = @transform_7, window_bounds = array<i64: 256, 128>}, {pipeline_mode = #tpu.pipeline_mode<synchronous>, transform_indices = @transform_8, window_bounds = array<i64: 1, 128>}, {pipeline_mode = #tpu.pipeline_mode<synchronous>, transform_indices = @transform_9, window_bounds = array<i64: 128, 128>}, {pipeline_mode = #tpu.pipeline_mode<synchronous>, transform_indices = @transform_10, window_bounds = array<i64: 1, 128>}, {pipeline_mode = #tpu.pipeline_mode<synchronous>, transform_indices = @transform_11, window_bounds = array<i64: 128, 128>}, {pipeline_mode = #tpu.pipeline_mode<synchronous>, transform_indices = @transform_12, window_bounds = array<i64: 1, 128>}, {pipeline_mode = #tpu.pipeline_mode<synchronous>, transform_indices = @transform_13, window_bounds = array<i64: 128, 128>}, {pipeline_mode = #tpu.pipeline_mode<synchronous>, transform_indices = @transform_14, window_bounds = array<i64: 1, 128>}, {pipeline_mode = #tpu.pipeline_mode<synchronous>, transform_indices = @transform_15, window_bounds = array<i64: 128, 16>}, {pipeline_mode = #tpu.pipeline_mode<synchronous>, transform_indices = @transform_16, window_bounds = array<i64: 1, 16>}, {transform_indices = @transform_17, window_bounds = array<i64: 8, 16>}]} {
    %c0 = arith.constant 0 : index
    %c0_0 = arith.constant 0 : index
    %0 = vector.load %arg1[%c0, %c0_0] : memref<8x16xf32, #tpu.memory_space<vmem>>, vector<8x16xf32>
    %1 = arith.truncf %0 : vector<8x16xf32> to vector<8x16xbf16>
    %c0_1 = arith.constant 0 : index
    %c0_2 = arith.constant 0 : index
    %2 = vector.load %arg2[%c0_1, %c0_2] : memref<16x128xbf16, #tpu.memory_space<vmem>>, vector<16x128xbf16>
    %cst = arith.constant dense<0.000000e+00> : vector<8x128xf32>
    %3 = tpu.matmul %1, %2, %cst {dimension_numbers = #tpu.dot_dimension_numbers<[1], [0], [0], [1], [0, 0, 1, 1], [], []>} : vector<8x16xbf16>, vector<16x128xbf16>, vector<8x128xf32> -> vector<8x128xf32>
    %c0_3 = arith.constant 0 : index
    %c0_4 = arith.constant 0 : index
    %4 = vector.load %arg3[%c0_3, %c0_4] : memref<1x128xf32, #tpu.memory_space<vmem>>, vector<1x128xf32>
    %5 = vector.broadcast %4 : vector<1x128xf32> to vector<8x128xf32>
    %6 = arith.addf %3, %5 : vector<8x128xf32>
    %cst_5 = arith.constant 0.000000e+00 : f32
    %7 = vector.broadcast %cst_5 : f32 to vector<8x128xf32>
    %8 = arith.maximumf %6, %7 : vector<8x128xf32>
    %9 = arith.truncf %8 : vector<8x128xf32> to vector<8x128xbf16>
    %c0_6 = arith.constant 0 : index
    %c0_7 = arith.constant 0 : index
    %10 = vector.load %arg4[%c0_6, %c0_7] : memref<128x128xbf16, #tpu.memory_space<vmem>>, vector<128x128xbf16>
    %cst_8 = arith.constant dense<0.000000e+00> : vector<8x128xf32>
    %11 = tpu.matmul %9, %10, %cst_8 {dimension_numbers = #tpu.dot_dimension_numbers<[1], [0], [0], [1], [0, 0, 1, 1], [], []>} : vector<8x128xbf16>, vector<128x128xbf16>, vector<8x128xf32> -> vector<8x128xf32>
    %c0_9 = arith.constant 0 : index
    %c0_10 = arith.constant 0 : index
    %12 = vector.load %arg5[%c0_9, %c0_10] : memref<1x128xf32, #tpu.memory_space<vmem>>, vector<1x128xf32>
    %13 = vector.broadcast %12 : vector<1x128xf32> to vector<8x128xf32>
    %14 = arith.addf %11, %13 : vector<8x128xf32>
    %cst_11 = arith.constant 0.000000e+00 : f32
    %15 = vector.broadcast %cst_11 : f32 to vector<8x128xf32>
    %16 = arith.maximumf %14, %15 : vector<8x128xf32>
    %17 = arith.truncf %16 : vector<8x128xf32> to vector<8x128xbf16>
    %c0_12 = arith.constant 0 : index
    %c0_13 = arith.constant 0 : index
    %18 = vector.load %arg6[%c0_12, %c0_13] : memref<128x256xbf16, #tpu.memory_space<vmem>>, vector<128x256xbf16>
    %cst_14 = arith.constant dense<0.000000e+00> : vector<8x256xf32>
    %19 = tpu.matmul %17, %18, %cst_14 {dimension_numbers = #tpu.dot_dimension_numbers<[1], [0], [0], [1], [0, 0, 1, 1], [], []>} : vector<8x128xbf16>, vector<128x256xbf16>, vector<8x256xf32> -> vector<8x256xf32>
    %c0_15 = arith.constant 0 : index
    %c0_16 = arith.constant 0 : index
    %20 = vector.load %arg7[%c0_15, %c0_16] : memref<1x256xf32, #tpu.memory_space<vmem>>, vector<1x256xf32>
    %21 = vector.broadcast %20 : vector<1x256xf32> to vector<8x256xf32>
    %22 = arith.addf %19, %21 : vector<8x256xf32>
    %cst_17 = arith.constant 0.000000e+00 : f32
    %23 = vector.broadcast %cst_17 : f32 to vector<8x256xf32>
    %24 = arith.maximumf %22, %23 : vector<8x256xf32>
    %25 = arith.truncf %24 : vector<8x256xf32> to vector<8x256xbf16>
    %c0_18 = arith.constant 0 : index
    %c0_19 = arith.constant 0 : index
    %26 = vector.load %arg8[%c0_18, %c0_19] : memref<256x128xbf16, #tpu.memory_space<vmem>>, vector<256x128xbf16>
    %cst_20 = arith.constant dense<0.000000e+00> : vector<8x128xf32>
    %27 = tpu.matmul %25, %26, %cst_20 {dimension_numbers = #tpu.dot_dimension_numbers<[1], [0], [0], [1], [0, 0, 1, 1], [], []>} : vector<8x256xbf16>, vector<256x128xbf16>, vector<8x128xf32> -> vector<8x128xf32>
    %c0_21 = arith.constant 0 : index
    %c0_22 = arith.constant 0 : index
    %28 = vector.load %arg9[%c0_21, %c0_22] : memref<1x128xf32, #tpu.memory_space<vmem>>, vector<1x128xf32>
    %29 = vector.broadcast %28 : vector<1x128xf32> to vector<8x128xf32>
    %30 = arith.addf %27, %29 : vector<8x128xf32>
    %cst_23 = arith.constant 0.000000e+00 : f32
    %31 = vector.broadcast %cst_23 : f32 to vector<8x128xf32>
    %32 = arith.maximumf %30, %31 : vector<8x128xf32>
    %33 = arith.truncf %32 : vector<8x128xf32> to vector<8x128xbf16>
    %c0_24 = arith.constant 0 : index
    %c0_25 = arith.constant 0 : index
    %34 = vector.load %arg10[%c0_24, %c0_25] : memref<128x128xbf16, #tpu.memory_space<vmem>>, vector<128x128xbf16>
    %cst_26 = arith.constant dense<0.000000e+00> : vector<8x128xf32>
    %35 = tpu.matmul %33, %34, %cst_26 {dimension_numbers = #tpu.dot_dimension_numbers<[1], [0], [0], [1], [0, 0, 1, 1], [], []>} : vector<8x128xbf16>, vector<128x128xbf16>, vector<8x128xf32> -> vector<8x128xf32>
    %c0_27 = arith.constant 0 : index
    %c0_28 = arith.constant 0 : index
    %36 = vector.load %arg11[%c0_27, %c0_28] : memref<1x128xf32, #tpu.memory_space<vmem>>, vector<1x128xf32>
    %37 = vector.broadcast %36 : vector<1x128xf32> to vector<8x128xf32>
    %38 = arith.addf %35, %37 : vector<8x128xf32>
    %cst_29 = arith.constant 0.000000e+00 : f32
    %39 = vector.broadcast %cst_29 : f32 to vector<8x128xf32>
    %40 = arith.maximumf %38, %39 : vector<8x128xf32>
    %41 = arith.truncf %40 : vector<8x128xf32> to vector<8x128xbf16>
    %c0_30 = arith.constant 0 : index
    %c0_31 = arith.constant 0 : index
    %42 = vector.load %arg12[%c0_30, %c0_31] : memref<128x128xbf16, #tpu.memory_space<vmem>>, vector<128x128xbf16>
    %cst_32 = arith.constant dense<0.000000e+00> : vector<8x128xf32>
    %43 = tpu.matmul %41, %42, %cst_32 {dimension_numbers = #tpu.dot_dimension_numbers<[1], [0], [0], [1], [0, 0, 1, 1], [], []>} : vector<8x128xbf16>, vector<128x128xbf16>, vector<8x128xf32> -> vector<8x128xf32>
    %c0_33 = arith.constant 0 : index
    %c0_34 = arith.constant 0 : index
    %44 = vector.load %arg13[%c0_33, %c0_34] : memref<1x128xf32, #tpu.memory_space<vmem>>, vector<1x128xf32>
    %45 = vector.broadcast %44 : vector<1x128xf32> to vector<8x128xf32>
    %46 = arith.addf %43, %45 : vector<8x128xf32>
    %cst_35 = arith.constant 0.000000e+00 : f32
    %47 = vector.broadcast %cst_35 : f32 to vector<8x128xf32>
    %48 = arith.maximumf %46, %47 : vector<8x128xf32>
    %49 = arith.truncf %48 : vector<8x128xf32> to vector<8x128xbf16>
    %c0_36 = arith.constant 0 : index
    %c0_37 = arith.constant 0 : index
    %50 = vector.load %arg14[%c0_36, %c0_37] : memref<128x128xbf16, #tpu.memory_space<vmem>>, vector<128x128xbf16>
    %cst_38 = arith.constant dense<0.000000e+00> : vector<8x128xf32>
    %51 = tpu.matmul %49, %50, %cst_38 {dimension_numbers = #tpu.dot_dimension_numbers<[1], [0], [0], [1], [0, 0, 1, 1], [], []>} : vector<8x128xbf16>, vector<128x128xbf16>, vector<8x128xf32> -> vector<8x128xf32>
    %c0_39 = arith.constant 0 : index
    %c0_40 = arith.constant 0 : index
    %52 = vector.load %arg15[%c0_39, %c0_40] : memref<1x128xf32, #tpu.memory_space<vmem>>, vector<1x128xf32>
    %53 = vector.broadcast %52 : vector<1x128xf32> to vector<8x128xf32>
    %54 = arith.addf %51, %53 : vector<8x128xf32>
    %cst_41 = arith.constant 0.000000e+00 : f32
    %55 = vector.broadcast %cst_41 : f32 to vector<8x128xf32>
    %56 = arith.maximumf %54, %55 : vector<8x128xf32>
    %57 = arith.truncf %56 : vector<8x128xf32> to vector<8x128xbf16>
    %c0_42 = arith.constant 0 : index
    %c0_43 = arith.constant 0 : index
    %58 = vector.load %arg16[%c0_42, %c0_43] : memref<128x16xbf16, #tpu.memory_space<vmem>>, vector<128x16xbf16>
    %cst_44 = arith.constant dense<0.000000e+00> : vector<8x16xf32>
    %59 = tpu.matmul %57, %58, %cst_44 {dimension_numbers = #tpu.dot_dimension_numbers<[1], [0], [0], [1], [0, 0, 1, 1], [], []>} : vector<8x128xbf16>, vector<128x16xbf16>, vector<8x16xf32> -> vector<8x16xf32>
    %c0_45 = arith.constant 0 : index
    %c0_46 = arith.constant 0 : index
    %60 = vector.load %arg17[%c0_45, %c0_46] : memref<1x16xf32, #tpu.memory_space<vmem>>, vector<1x16xf32>
    %61 = vector.broadcast %60 : vector<1x16xf32> to vector<8x16xf32>
    %62 = arith.addf %59, %61 : vector<8x16xf32>
    %cst_47 = arith.constant 0.000000e+00 : f32
    %63 = vector.broadcast %cst_47 : f32 to vector<8x16xf32>
    %64 = arith.subf %63, %62 : vector<8x16xf32>
    %65 = math.exp %64 : vector<8x16xf32>
    %cst_48 = arith.constant 1.000000e+00 : f32
    %66 = vector.broadcast %cst_48 : f32 to vector<8x16xf32>
    %67 = arith.addf %66, %65 : vector<8x16xf32>
    %cst_49 = arith.constant 1.000000e+00 : f32
    %68 = vector.broadcast %cst_49 : f32 to vector<8x16xf32>
    %69 = arith.divf %68, %67 : vector<8x16xf32>
    %c0_50 = arith.constant 0 : index
    %c0_51 = arith.constant 0 : index
    %70 = vector.load %arg18[%c0_50, %c0_51] : memref<8x16xf32, #tpu.memory_space<vmem>>, vector<8x16xf32>
    tpu.vector_store %arg18[%c0_50, %c0_51], %69 {strides = array<i32>} : memref<8x16xf32, #tpu.memory_space<vmem>>, vector<8x16xf32>,
    return
  }
  func.func @transform_0(%arg0: i32) -> (i32, i32) {
    %c0_i32 = arith.constant 0 : i32
    %c0_i32_0 = arith.constant 0 : i32
    return %arg0, %c0_i32 : i32, i32
  }
  func.func @transform_1(%arg0: i32) -> (i32, i32) {
    %c0_i32 = arith.constant 0 : i32
    %c0_i32_0 = arith.constant 0 : i32
    %c0_i32_1 = arith.constant 0 : i32
    return %c0_i32, %c0_i32_0 : i32, i32
  }
  func.func @transform_2(%arg0: i32) -> (i32, i32) {
    %c0_i32 = arith.constant 0 : i32
    %c0_i32_0 = arith.constant 0 : i32
    %c0_i32_1 = arith.constant 0 : i32
    return %c0_i32, %c0_i32_0 : i32, i32
  }
  func.func @transform_3(%arg0: i32) -> (i32, i32) {
    %c0_i32 = arith.constant 0 : i32
    %c0_i32_0 = arith.constant 0 : i32
    %c0_i32_1 = arith.constant 0 : i32
    return %c0_i32, %c0_i32_0 : i32, i32
  }
  func.func @transform_4(%arg0: i32) -> (i32, i32) {
    %c0_i32 = arith.constant 0 : i32
    %c0_i32_0 = arith.constant 0 : i32
    %c0_i32_1 = arith.constant 0 : i32
    return %c0_i32, %c0_i32_0 : i32, i32
  }
  func.func @transform_5(%arg0: i32) -> (i32, i32) {
    %c0_i32 = arith.constant 0 : i32
    %c0_i32_0 = arith.constant 0 : i32
    %c0_i32_1 = arith.constant 0 : i32
    return %c0_i32, %c0_i32_0 : i32, i32
  }
  func.func @transform_6(%arg0: i32) -> (i32, i32) {
    %c0_i32 = arith.constant 0 : i32
    %c0_i32_0 = arith.constant 0 : i32
    %c0_i32_1 = arith.constant 0 : i32
    return %c0_i32, %c0_i32_0 : i32, i32
  }
  func.func @transform_7(%arg0: i32) -> (i32, i32) {
    %c0_i32 = arith.constant 0 : i32
    %c0_i32_0 = arith.constant 0 : i32
    %c0_i32_1 = arith.constant 0 : i32
    return %c0_i32, %c0_i32_0 : i32, i32
  }
  func.func @transform_8(%arg0: i32) -> (i32, i32) {
    %c0_i32 = arith.constant 0 : i32
    %c0_i32_0 = arith.constant 0 : i32
    %c0_i32_1 = arith.constant 0 : i32
    return %c0_i32, %c0_i32_0 : i32, i32
  }
  func.func @transform_9(%arg0: i32) -> (i32, i32) {
    %c0_i32 = arith.constant 0 : i32
    %c0_i32_0 = arith.constant 0 : i32
    %c0_i32_1 = arith.constant 0 : i32
    return %c0_i32, %c0_i32_0 : i32, i32
  }
  func.func @transform_10(%arg0: i32) -> (i32, i32) {
    %c0_i32 = arith.constant 0 : i32
    %c0_i32_0 = arith.constant 0 : i32
    %c0_i32_1 = arith.constant 0 : i32
    return %c0_i32, %c0_i32_0 : i32, i32
  }
  func.func @transform_11(%arg0: i32) -> (i32, i32) {
    %c0_i32 = arith.constant 0 : i32
    %c0_i32_0 = arith.constant 0 : i32
    %c0_i32_1 = arith.constant 0 : i32
    return %c0_i32, %c0_i32_0 : i32, i32
  }
  func.func @transform_12(%arg0: i32) -> (i32, i32) {
    %c0_i32 = arith.constant 0 : i32
    %c0_i32_0 = arith.constant 0 : i32
    %c0_i32_1 = arith.constant 0 : i32
    return %c0_i32, %c0_i32_0 : i32, i32
  }
  func.func @transform_13(%arg0: i32) -> (i32, i32) {
    %c0_i32 = arith.constant 0 : i32
    %c0_i32_0 = arith.constant 0 : i32
    %c0_i32_1 = arith.constant 0 : i32
    return %c0_i32, %c0_i32_0 : i32, i32
  }
  func.func @transform_14(%arg0: i32) -> (i32, i32) {
    %c0_i32 = arith.constant 0 : i32
    %c0_i32_0 = arith.constant 0 : i32
    %c0_i32_1 = arith.constant 0 : i32
    return %c0_i32, %c0_i32_0 : i32, i32
  }
  func.func @transform_15(%arg0: i32) -> (i32, i32) {
    %c0_i32 = arith.constant 0 : i32
    %c0_i32_0 = arith.constant 0 : i32
    %c0_i32_1 = arith.constant 0 : i32
    return %c0_i32, %c0_i32_0 : i32, i32
  }
  func.func @transform_16(%arg0: i32) -> (i32, i32) {
    %c0_i32 = arith.constant 0 : i32
    %c0_i32_0 = arith.constant 0 : i32
    %c0_i32_1 = arith.constant 0 : i32
    return %c0_i32, %c0_i32_0 : i32, i32
  }
  func.func @transform_17(%arg0: i32) -> (i32, i32) {
    %c0_i32 = arith.constant 0 : i32
    %c0_i32_0 = arith.constant 0 : i32
    return %arg0, %c0_i32 : i32, i32
  }
}

</mosaic_0001>

<llo_original>
// kernel: _forward_impl.1
$region0: #{_forward_impl.1}
  #allocation0 [shape = 'u32[]', space=smem, size = 0x4, offset = 0x4, fixed_abs, tag = 'smem constant byte address 0x4 - core index']
  #allocation1 [shape = 'u32[144,128]{1,0:T(1,128)}', space=vmem, size = 0x12000, scoped, tag = 'internal scratch']
  %s0 = inlined_call_operand.vmem [shape: f32[8,16], index: 0, kind: input, shape index: {}]
  %s1 = inlined_call_operand.vmem [shape: bf16[16,128], index: 1, kind: input, shape index: {}]
  %s2 = inlined_call_operand.vmem [shape: f32[1,128], index: 2, kind: input, shape index: {}]
  %s3 = inlined_call_operand.vmem [shape: bf16[128,128], index: 3, kind: input, shape index: {}]
  %s4 = inlined_call_operand.vmem [shape: f32[1,128], index: 4, kind: input, shape index: {}]
  %s5 = inlined_call_operand.hbm [shape: bf16[128,256], index: 5, kind: input, shape index: {}]
  %s6 = inlined_call_operand.vmem [shape: f32[1,256], index: 6, kind: input, shape index: {}]
  %s7 = inlined_call_operand.hbm [shape: bf16[256,128], index: 7, kind: input, shape index: {}]
  %s8 = inlined_call_operand.vmem [shape: f32[1,128], index: 8, kind: input, shape index: {}]
  %s9 = inlined_call_operand.hbm [shape: bf16[128,128], index: 9, kind: input, shape index: {}]
  %s10 = inlined_call_operand.vmem [shape: f32[1,128], index: 10, kind: input, shape index: {}]
  %s11 = inlined_call_operand.hbm [shape: bf16[128,128], index: 11, kind: input, shape index: {}]
  %s12 = inlined_call_operand.vmem [shape: f32[1,128], index: 12, kind: input, shape index: {}]
  %s13 = inlined_call_operand.hbm [shape: bf16[128,128], index: 13, kind: input, shape index: {}]
  %s14 = inlined_call_operand.vmem [shape: f32[1,128], index: 14, kind: input, shape index: {}]
  %s15 = inlined_call_operand.vmem [shape: bf16[128,16], index: 15, kind: input, shape index: {}]
  %s16 = inlined_call_operand.vmem [shape: f32[1,16], index: 16, kind: input, shape index: {}]
  %s17 = inlined_call_operand.vmem [shape: f32[8,16], index: 17, kind: output, shape index: {}]
  %s18 = sld [smem:[#allocation0]]
  $region98: #{_forward_impl.1} parent=0
    _
  %s20 = ssub.s32 1, %s18
  %s21 = scalar_select 0, %s20, %s18
  $region1: #{_forward_impl.1} parent=0
    #allocation2 [shape = 'u8[65536]{0}', space=vmem, size = 0x10000, scoped, tag = 'input window, operand 5, single buffered']
    #allocation3 [shape = 's32[1]{0}', space=sflag, size = 0x4, scoped, tag = 'scoped memory for _forward_impl.1']
    #allocation4 [shape = 'u8[65536]{0}', space=vmem, size = 0x10000, scoped, tag = 'input window, operand 7, single buffered']
    #allocation5 [shape = 's32[1]{0}', space=sflag, size = 0x4, scoped, tag = 'scoped memory for _forward_impl.1']
    #allocation6 [shape = 'u8[32768]{0}', space=vmem, size = 0x8000, scoped, tag = 'input window, operand 9, single buffered']
    #allocation7 [shape = 'u8[32768]{0}', space=vmem, size = 0x8000, scoped, tag = 'input window, operand 11, single buffered']
    #allocation8 [shape = 's32[1]{0}', space=sflag, size = 0x4, scoped, tag = 'scoped memory for _forward_impl.1']
    #allocation9 [shape = 'u8[32768]{0}', space=vmem, size = 0x8000, scoped, tag = 'input window, operand 13, single buffered']
    %22 = vsyncpa [#allocation3], 0
    %23 = vsyncpa [#allocation5], 0
    %24 = vsyncpa [#allocation8], 0
    // Predicated region
    $region2: #{_forward_impl.1} parent=1 // pred_check
      _
    $region3: #{_forward_impl.1} parent=1 // pred_check_branch
      %26 = sbr.rel (0) target = $region5
    $region4: #{_forward_impl.1} parent=1 // pred_region
      _
    $region5: #{_forward_impl.1} parent=1 // pred_fallthru
      _
    // Predicated region
    $region6: #{_forward_impl.1} parent=1 // pred_check
      _
    $region7: #{_forward_impl.1} parent=1 // pred_check_branch
      %28 = sbr.rel (0) target = $region9
    $region8: #{_forward_impl.1} parent=1 // pred_region
      _
    $region9: #{_forward_impl.1} parent=1 // pred_fallthru
      _
    // Predicated region
    $region10: #{_forward_impl.1} parent=1 // pred_check
      _
    $region11: #{_forward_impl.1} parent=1 // pred_check_branch
      %30 = sbr.rel (0) target = $region13
    $region12: #{_forward_impl.1} parent=1 // pred_region
      _
    $region13: #{_forward_impl.1} parent=1 // pred_fallthru
      _
    // Predicated region
    $region14: #{_forward_impl.1} parent=1 // pred_check
      _
    $region15: #{_forward_impl.1} parent=1 // pred_check_branch
      %32 = sbr.rel (0) target = $region17
    $region16: #{_forward_impl.1} parent=1 // pred_region
      _
    $region17: #{_forward_impl.1} parent=1 // pred_fallthru
      _
    // Predicated region
    $region18: #{_forward_impl.1} parent=1 // pred_check
      _
    $region19: #{_forward_impl.1} parent=1 // pred_check_branch
      %34 = sbr.rel (0) target = $region21
    $region20: #{_forward_impl.1} parent=1 // pred_region
      _
    $region21: #{_forward_impl.1} parent=1 // pred_fallthru
      _
    // Predicated region
    $region22: #{_forward_impl.1} parent=1 // pred_check
      _
    $region23: #{_forward_impl.1} parent=1 // pred_check_branch
      %36 = sbr.rel (0) target = $region25
    $region24: #{_forward_impl.1} parent=1 // pred_region
      %s38 = ssub.s32 2048, 2048
      %39 = vsyncadd [#allocation3], %s38
      %s40 = sshll.u32 [#allocation2], 4
      %s41 = int_to_ptr.vmem [resolvable:$true] %s40
      %46 = dma.hbm_to_vmem [thread:$0]  %s5, 2048, %s41, [#allocation3], 128, 128, 8
    $region25: #{_forward_impl.1} parent=1 // pred_fallthru
      _
    // Predicated region
    $region26: #{_forward_impl.1} parent=1 // pred_check
      _
    $region27: #{_forward_impl.1} parent=1 // pred_check_branch
      %48 = sbr.rel (0) target = $region29
    $region28: #{_forward_impl.1} parent=1 // pred_region
      _
    $region29: #{_forward_impl.1} parent=1 // pred_fallthru
      _
    // Predicated region
    $region30: #{_forward_impl.1} parent=1 // pred_check
      _
    $region31: #{_forward_impl.1} parent=1 // pred_check_branch
      %50 = sbr.rel (0) target = $region33
    $region32: #{_forward_impl.1} parent=1 // pred_region
      %s52 = ssub.s32 2048, 2048
      %53 = vsyncadd [#allocation5], %s52
      %s54 = sshll.u32 [#allocation4], 4
      %s55 = int_to_ptr.vmem [resolvable:$true] %s54
      %60 = dma.hbm_to_vmem [thread:$0]  %s7, 2048, %s55, [#allocation5], 64, 64, 4
    $region33: #{_forward_impl.1} parent=1 // pred_fallthru
      _
    // Predicated region
    $region34: #{_forward_impl.1} parent=1 // pred_check
      _
    $region35: #{_forward_impl.1} parent=1 // pred_check_branch
      %62 = sbr.rel (0) target = $region37
    $region36: #{_forward_impl.1} parent=1 // pred_region
      _
    $region37: #{_forward_impl.1} parent=1 // pred_fallthru
      _
    // Predicated region
    $region38: #{_forward_impl.1} parent=1 // pred_check
      _
    $region39: #{_forward_impl.1} parent=1 // pred_check_branch
      %64 = sbr.rel (0) target = $region41
    $region40: #{_forward_impl.1} parent=1 // pred_region
      %s66 = ssub.s32 1024, 1024
      %67 = vsyncadd [#allocation5], %s66
      %s68 = sshll.u32 [#allocation6], 4
      %s69 = int_to_ptr.vmem [resolvable:$true] %s68
      %74 = dma.hbm_to_vmem [thread:$0]  %s9, 1024, %s69, [#allocation5], 64, 64, 4
    $region41: #{_forward_impl.1} parent=1 // pred_fallthru
      _
    // Predicated region
    $region42: #{_forward_impl.1} parent=1 // pred_check
      _
    $region43: #{_forward_impl.1} parent=1 // pred_check_branch
      %76 = sbr.rel (0) target = $region45
    $region44: #{_forward_impl.1} parent=1 // pred_region
      _
    $region45: #{_forward_impl.1} parent=1 // pred_fallthru
      _
    // Predicated region
    $region46: #{_forward_impl.1} parent=1 // pred_check
      _
    $region47: #{_forward_impl.1} parent=1 // pred_check_branch
      %78 = sbr.rel (0) target = $region49
    $region48: #{_forward_impl.1} parent=1 // pred_region
      %s80 = ssub.s32 1024, 1024
      %81 = vsyncadd [#allocation8], %s80
      %s82 = sshll.u32 [#allocation7], 4
      %s83 = int_to_ptr.vmem [resolvable:$true] %s82
      %88 = dma.hbm_to_vmem [thread:$0]  %s11, 1024, %s83, [#allocation8], 64, 64, 4
    $region49: #{_forward_impl.1} parent=1 // pred_fallthru
      _
    // Predicated region
    $region50: #{_forward_impl.1} parent=1 // pred_check
      _
    $region51: #{_forward_impl.1} parent=1 // pred_check_branch
      %90 = sbr.rel (0) target = $region53
    $region52: #{_forward_impl.1} parent=1 // pred_region
      _
    $region53: #{_forward_impl.1} parent=1 // pred_fallthru
      _
    // Predicated region
    $region54: #{_forward_impl.1} parent=1 // pred_check
      _
    $region55: #{_forward_impl.1} parent=1 // pred_check_branch
      %92 = sbr.rel (0) target = $region57
    $region56: #{_forward_impl.1} parent=1 // pred_region
      %s94 = ssub.s32 1024, 1024
      %95 = vsyncadd [#allocation8], %s94
      %s96 = sshll.u32 [#allocation9], 4
      %s97 = int_to_ptr.vmem [resolvable:$true] %s96
      %102 = dma.hbm_to_vmem [thread:$0]  %s13, 1024, %s97, [#allocation8], 64, 64, 4
    $region57: #{_forward_impl.1} parent=1 // pred_fallthru
      _
    // Predicated region
    $region58: #{_forward_impl.1} parent=1 // pred_check
      _
    $region59: #{_forward_impl.1} parent=1 // pred_check_branch
      %104 = sbr.rel (0) target = $region61
    $region60: #{_forward_impl.1} parent=1 // pred_region
      _
    $region61: #{_forward_impl.1} parent=1 // pred_fallthru
      _
    // Predicated region
    $region62: #{_forward_impl.1} parent=1 // pred_check
      _
    $region63: #{_forward_impl.1} parent=1 // pred_check_branch
      %106 = sbr.rel (0) target = $region65
    $region64: #{_forward_impl.1} parent=1 // pred_region
      _
    $region65: #{_forward_impl.1} parent=1 // pred_fallthru
      _
    // Predicated region
    $region66: #{_forward_impl.1} parent=1 // pred_check
      _
    $region67: #{_forward_impl.1} parent=1 // pred_check_branch
      %108 = sbr.rel (0) target = $region69
    $region68: #{_forward_impl.1} parent=1 // pred_region
      _
    $region69: #{_forward_impl.1} parent=1 // pred_fallthru
      _
    // Predicated region
    $region70: #{_forward_impl.1} parent=1 // pred_check
      _
    $region71: #{_forward_impl.1} parent=1 // pred_check_branch
      %110 = sbr.rel (0) target = $region73
    $region72: #{_forward_impl.1} parent=1 // pred_region
      %111 = dma.done [#allocation3], 2048
    $region73: #{_forward_impl.1} parent=1 // pred_fallthru
      _
    // Predicated region
    $region74: #{_forward_impl.1} parent=1 // pred_check
      _
    $region75: #{_forward_impl.1} parent=1 // pred_check_branch
      %113 = sbr.rel (0) target = $region77
    $region76: #{_forward_impl.1} parent=1 // pred_region
      %114 = dma.done [#allocation5], 2048
    $region77: #{_forward_impl.1} parent=1 // pred_fallthru
      _
    // Predicated region
    $region78: #{_forward_impl.1} parent=1 // pred_check
      _
    $region79: #{_forward_impl.1} parent=1 // pred_check_branch
      %116 = sbr.rel (0) target = $region81
    $region80: #{_forward_impl.1} parent=1 // pred_region
      %117 = dma.done [#allocation5], 1024
    $region81: #{_forward_impl.1} parent=1 // pred_fallthru
      _
    // Predicated region
    $region82: #{_forward_impl.1} parent=1 // pred_check
      _
    $region83: #{_forward_impl.1} parent=1 // pred_check_branch
      %119 = sbr.rel (0) target = $region85
    $region84: #{_forward_impl.1} parent=1 // pred_region
      %120 = dma.done [#allocation8], 1024
    $region85: #{_forward_impl.1} parent=1 // pred_fallthru
      _
    // Predicated region
    $region86: #{_forward_impl.1} parent=1 // pred_check
      _
    $region87: #{_forward_impl.1} parent=1 // pred_check_branch
      %122 = sbr.rel (0) target = $region89
    $region88: #{_forward_impl.1} parent=1 // pred_region
      %123 = dma.done [#allocation8], 1024
    $region89: #{_forward_impl.1} parent=1 // pred_fallthru
      _
    %v125 = vld [vmem:[%s0] sm:$0xff]
    %v126 = vpack.c.bf16 %v125, %v125
    %v127 = vld [vmem:[%s1] sm:$0xf]
    %v128 = vld [vmem:[%s1 + $0x4] sm:$0xf]
    %v129 = vld [vmem:[%s2] sm:$0x1]
    %v131 = vlaneseq
    %v132 = vshrl.u32 %v131, 7
    %v133 = vsub.s32 0, %v132
    %v134 = vrot.slane %v129, %v133
    %v138 = vunpack.c.l.b16 %v127
    %v139 = vunpack.c.l.b16 %v128
    %v140 = vpack.c.b16 %v139, %v138
    %vm142 = vcmask 130048
    %v144 = vsel %vm142, %v126, 0
    %146 = vmatprep.subr.bf16.mxu0 0
    %147 = vmatpush1.bf16.msra.mxu0 %v140
    %148 = vmatprep.subr.bf16.mxu0 0
    %149 = vmatpush1.bf16.msra.mxu0 0
    %150 = vmatprep.subr.bf16.mxu0 0
    %151 = vmatpush1.bf16.msra.mxu0 0
    %152 = vmatprep.subr.bf16.mxu0 0
    %153 = vmatpush1.bf16.msra.mxu0 0
    %154 = vmatprep.subr.bf16.mxu0 0
    %155 = vmatpush1.bf16.msra.mxu0 0
    %156 = vmatprep.subr.bf16.mxu0 0
    %157 = vmatpush1.bf16.msra.mxu0 0
    %158 = vmatprep.subr.bf16.mxu0 0
    %159 = vmatpush1.bf16.msra.mxu0 0
    %160 = vmatprep.subr.bf16.mxu0 0
    %161 = vmatpush1.bf16.msra.mxu0 0
    %162 = vmatprep.subr.bf16.mxu0 0
    %163 = vmatpush1.bf16.msra.mxu0 0
    %164 = vmatprep.subr.bf16.mxu0 0
    %165 = vmatpush1.bf16.msra.mxu0 0
    %166 = vmatprep.subr.bf16.mxu0 0
    %167 = vmatpush1.bf16.msra.mxu0 0
    %168 = vmatprep.subr.bf16.mxu0 0
    %169 = vmatpush1.bf16.msra.mxu0 0
    %170 = vmatprep.subr.bf16.mxu0 0
    %171 = vmatpush1.bf16.msra.mxu0 0
    %172 = vmatprep.subr.bf16.mxu0 0
    %173 = vmatpush1.bf16.msra.mxu0 0
    %174 = vmatprep.subr.bf16.mxu0 0
    %175 = vmatpush1.bf16.msra.mxu0 0
    %176 = vmatprep.subr.bf16.mxu0 0
    %177 = vmatpush1.bf16.msra.mxu0 0
    %178 = vmatprep.mubr.bf16.mxu0 0
    %179 = vmatmul.mubr.bf16.gmra.mrb[0].mxu0 %v144
    %v180 = vpop.f32.mrb[0].mxu0
    %v181 = vadd.f32 %v134, %v180
    %v182 = vpop.f32.mrb[0].mxu0
    %v183 = vpop.f32.mrb[0].mxu0
    %v184 = vpop.f32.mrb[0].mxu0
    %185 = vdwg.mxu0
    %v186 = vmax.f32 %v181, 0.0
    %v187 = vpack.c.bf16 %v186, %v186
    %v188 = vld [vmem:[%s3] sm:$0xf]
    %v189 = vld [vmem:[%s3 + $0x4] sm:$0xf]
    %v190 = vld [vmem:[%s3 + $0x8] sm:$0xf]
    %v191 = vld [vmem:[%s3 + $0xc] sm:$0xf]
    %v192 = vld [vmem:[%s3 + $0x10] sm:$0xf]
    %v193 = vld [vmem:[%s3 + $0x14] sm:$0xf]
    %v194 = vld [vmem:[%s3 + $0x18] sm:$0xf]
    %v195 = vld [vmem:[%s3 + $0x1c] sm:$0xf]
    %v196 = vld [vmem:[%s3 + $0x20] sm:$0xf]
    %v197 = vld [vmem:[%s3 + $0x24] sm:$0xf]
    %v198 = vld [vmem:[%s3 + $0x28] sm:$0xf]
    %v199 = vld [vmem:[%s3 + $0x2c] sm:$0xf]
    %v200 = vld [vmem:[%s3 + $0x30] sm:$0xf]
    %v201 = vld [vmem:[%s3 + $0x34] sm:$0xf]
    %v202 = vld [vmem:[%s3 + $0x38] sm:$0xf]
    %v203 = vld [vmem:[%s3 + $0x3c] sm:$0xf]
    %v204 = vld [vmem:[%s4] sm:$0x1]
    %v206 = vlaneseq
    %v207 = vshrl.u32 %v206, 7
    %v208 = vsub.s32 0, %v207
    %v209 = vrot.slane %v204, %v208
    %v227 = vunpack.c.l.b16 %v188
    %v228 = vunpack.c.l.b16 %v189
    %v229 = vunpack.c.l.b16 %v190
    %v230 = vunpack.c.l.b16 %v191
    %v231 = vunpack.c.l.b16 %v192
    %v232 = vunpack.c.l.b16 %v193
    %v233 = vunpack.c.l.b16 %v194
    %v234 = vunpack.c.l.b16 %v195
    %v235 = vunpack.c.l.b16 %v196
    %v236 = vunpack.c.l.b16 %v197
    %v237 = vunpack.c.l.b16 %v198
    %v238 = vunpack.c.l.b16 %v199
    %v239 = vunpack.c.l.b16 %v200
    %v240 = vunpack.c.l.b16 %v201
    %v241 = vunpack.c.l.b16 %v202
    %v242 = vunpack.c.l.b16 %v203
    %v243 = vpack.c.b16 %v228, %v227
    %v244 = vpack.c.b16 %v230, %v229
    %v245 = vpack.c.b16 %v232, %v231
    %v246 = vpack.c.b16 %v234, %v233
    %v247 = vpack.c.b16 %v236, %v235
    %v248 = vpack.c.b16 %v238, %v237
    %v249 = vpack.c.b16 %v240, %v239
    %v250 = vpack.c.b16 %v242, %v241
    %259 = vmatprep.subr.bf16.mxu0 0
    %260 = vmatpush1.bf16.msra.mxu0 %v243
    %261 = vmatprep.subr.bf16.mxu0 0
    %262 = vmatpush1.bf16.msra.mxu0 %v244
    %263 = vmatprep.subr.bf16.mxu0 0
    %264 = vmatpush1.bf16.msra.mxu0 %v245
    %265 = vmatprep.subr.bf16.mxu0 0
    %266 = vmatpush1.bf16.msra.mxu0 %v246
    %267 = vmatprep.subr.bf16.mxu0 0
    %268 = vmatpush1.bf16.msra.mxu0 %v247
    %269 = vmatprep.subr.bf16.mxu0 0
    %270 = vmatpush1.bf16.msra.mxu0 %v248
    %271 = vmatprep.subr.bf16.mxu0 0
    %272 = vmatpush1.bf16.msra.mxu0 %v249
    %273 = vmatprep.subr.bf16.mxu0 0
    %274 = vmatpush1.bf16.msra.mxu0 %v250
    %275 = vmatprep.subr.bf16.mxu0 0
    %276 = vmatpush1.bf16.msra.mxu0 0
    %277 = vmatprep.subr.bf16.mxu0 0
    %278 = vmatpush1.bf16.msra.mxu0 0
    %279 = vmatprep.subr.bf16.mxu0 0
    %280 = vmatpush1.bf16.msra.mxu0 0
    %281 = vmatprep.subr.bf16.mxu0 0
    %282 = vmatpush1.bf16.msra.mxu0 0
    %283 = vmatprep.subr.bf16.mxu0 0
    %284 = vmatpush1.bf16.msra.mxu0 0
    %285 = vmatprep.subr.bf16.mxu0 0
    %286 = vmatpush1.bf16.msra.mxu0 0
    %287 = vmatprep.subr.bf16.mxu0 0
    %288 = vmatpush1.bf16.msra.mxu0 0
    %289 = vmatprep.subr.bf16.mxu0 0
    %290 = vmatpush1.bf16.msra.mxu0 0
    %291 = vmatprep.mubr.bf16.mxu0 0
    %292 = vmatmul.mubr.bf16.gmra.mrb[0].mxu0 %v187
    %v293 = vpop.f32.mrb[0].mxu0
    %v294 = vadd.f32 %v209, %v293
    %v295 = vpop.f32.mrb[0].mxu0
    %v296 = vpop.f32.mrb[0].mxu0
    %v297 = vpop.f32.mrb[0].mxu0
    %298 = vdwg.mxu0
    %v299 = vmax.f32 %v294, 0.0
    %v300 = vpack.c.bf16 %v299, %v299
    %v301 = vld [vmem:[#allocation2] sm:$0xff]
    %v302 = vld [vmem:[#allocation2 + $0x8] sm:$0xff]
    %v303 = vld [vmem:[#allocation2 + $0x10] sm:$0xff]
    %v304 = vld [vmem:[#allocation2 + $0x18] sm:$0xff]
    %v305 = vld [vmem:[#allocation2 + $0x20] sm:$0xff]
    %v306 = vld [vmem:[#allocation2 + $0x28] sm:$0xff]
    %v307 = vld [vmem:[#allocation2 + $0x30] sm:$0xff]
    %v308 = vld [vmem:[#allocation2 + $0x38] sm:$0xff]
    %v309 = vld [vmem:[#allocation2 + $0x40] sm:$0xff]
    %v310 = vld [vmem:[#allocation2 + $0x48] sm:$0xff]
    %v311 = vld [vmem:[#allocation2 + $0x50] sm:$0xff]
    %v312 = vld [vmem:[#allocation2 + $0x58] sm:$0xff]
    %v313 = vld [vmem:[#allocation2 + $0x60] sm:$0xff]
    %v314 = vld [vmem:[#allocation2 + $0x68] sm:$0xff]
    %v315 = vld [vmem:[#allocation2 + $0x70] sm:$0xff]
    %v316 = vld [vmem:[#allocation2 + $0x78] sm:$0xff]
    %v317 = vld [vmem:[%s6] sm:$0x3]
    %v319 = vlaneseq
    %v320 = vshrl.u32 %v319, 7
    %v321 = vsub.s32 0, %v320
    %v322 = vrot.slane %v317, %v321
    %v323 = vlaneseq
    %v324 = vshrl.u32 %v323, 7
    %v325 = vsub.s32 1, %v324
    %v326 = vrot.slane %v317, %v325
    %v345 = vunpack.c.l.b16 %v301
    %v346 = vunpack.c.h.b16 %v301
    %v347 = vunpack.c.l.b16 %v302
    %v348 = vunpack.c.h.b16 %v302
    %v349 = vunpack.c.l.b16 %v303
    %v350 = vunpack.c.h.b16 %v303
    %v351 = vunpack.c.l.b16 %v304
    %v352 = vunpack.c.h.b16 %v304
    %v353 = vunpack.c.l.b16 %v305
    %v354 = vunpack.c.h.b16 %v305
    %v355 = vunpack.c.l.b16 %v306
    %v356 = vunpack.c.h.b16 %v306
    %v357 = vunpack.c.l.b16 %v307
    %v358 = vunpack.c.h.b16 %v307
    %v359 = vunpack.c.l.b16 %v308
    %v360 = vunpack.c.h.b16 %v308
    %v361 = vunpack.c.l.b16 %v309
    %v362 = vunpack.c.h.b16 %v309
    %v363 = vunpack.c.l.b16 %v310
    %v364 = vunpack.c.h.b16 %v310
    %v365 = vunpack.c.l.b16 %v311
    %v366 = vunpack.c.h.b16 %v311
    %v367 = vunpack.c.l.b16 %v312
    %v368 = vunpack.c.h.b16 %v312
    %v369 = vunpack.c.l.b16 %v313
    %v370 = vunpack.c.h.b16 %v313
    %v371 = vunpack.c.l.b16 %v314
    %v372 = vunpack.c.h.b16 %v314
    %v373 = vunpack.c.l.b16 %v315
    %v374 = vunpack.c.h.b16 %v315
    %v375 = vunpack.c.l.b16 %v316
    %v376 = vunpack.c.h.b16 %v316
    %v377 = vpack.c.b16 %v347, %v345
    %v378 = vpack.c.b16 %v348, %v346
    %v379 = vpack.c.b16 %v351, %v349
    %v380 = vpack.c.b16 %v352, %v350
    %v381 = vpack.c.b16 %v355, %v353
    %v382 = vpack.c.b16 %v356, %v354
    %v383 = vpack.c.b16 %v359, %v357
    %v384 = vpack.c.b16 %v360, %v358
    %v385 = vpack.c.b16 %v363, %v361
    %v386 = vpack.c.b16 %v364, %v362
    %v387 = vpack.c.b16 %v367, %v365
    %v388 = vpack.c.b16 %v368, %v366
    %v389 = vpack.c.b16 %v371, %v369
    %v390 = vpack.c.b16 %v372, %v370
    %v391 = vpack.c.b16 %v375, %v373
    %v392 = vpack.c.b16 %v376, %v374
    %409 = vmatprep.subr.bf16.mxu0 %v378
    %410 = vmatpush1.bf16.msra.mxu0 %v377
    %411 = vmatprep.subr.bf16.mxu0 %v380
    %412 = vmatpush1.bf16.msra.mxu0 %v379
    %413 = vmatprep.subr.bf16.mxu0 %v382
    %414 = vmatpush1.bf16.msra.mxu0 %v381
    %415 = vmatprep.subr.bf16.mxu0 %v384
    %416 = vmatpush1.bf16.msra.mxu0 %v383
    %417 = vmatprep.subr.bf16.mxu0 %v386
    %418 = vmatpush1.bf16.msra.mxu0 %v385
    %419 = vmatprep.subr.bf16.mxu0 %v388
    %420 = vmatpush1.bf16.msra.mxu0 %v387
    %421 = vmatprep.subr.bf16.mxu0 %v390
    %422 = vmatpush1.bf16.msra.mxu0 %v389
    %423 = vmatprep.subr.bf16.mxu0 %v392
    %424 = vmatpush1.bf16.msra.mxu0 %v391
    %425 = vmatprep.subr.bf16.mxu0 0
    %426 = vmatpush1.bf16.msra.mxu0 0
    %427 = vmatprep.subr.bf16.mxu0 0
    %428 = vmatpush1.bf16.msra.mxu0 0
    %429 = vmatprep.subr.bf16.mxu0 0
    %430 = vmatpush1.bf16.msra.mxu0 0
    %431 = vmatprep.subr.bf16.mxu0 0
    %432 = vmatpush1.bf16.msra.mxu0 0
    %433 = vmatprep.subr.bf16.mxu0 0
    %434 = vmatpush1.bf16.msra.mxu0 0
    %435 = vmatprep.subr.bf16.mxu0 0
    %436 = vmatpush1.bf16.msra.mxu0 0
    %437 = vmatprep.subr.bf16.mxu0 0
    %438 = vmatpush1.bf16.msra.mxu0 0
    %439 = vmatprep.subr.bf16.mxu0 0
    %440 = vmatpush1.bf16.msra.mxu0 0
    %441 = vmatprep.mubr.bf16.mxu0 0
    %442 = vmatmul.mubr.bf16.gmra.mrb[0].mxu0 %v300
    %v443 = vpop.f32.mrb[0].mxu0
    %v444 = vadd.f32 %v322, %v443
    %v445 = vpop.f32.mrb[0].mxu0
    %v446 = vadd.f32 %v326, %v445
    %v447 = vpop.f32.mrb[0].mxu0
    %v448 = vpop.f32.mrb[0].mxu0
    %449 = vdwg.mxu0
    %v450 = vmax.f32 %v444, 0.0
    %v451 = vmax.f32 %v446, 0.0
    %v452 = vpack.c.bf16 %v450, %v450
    %v453 = vpack.c.bf16 %v451, %v451
    %v454 = vld [vmem:[#allocation4] sm:$0xf]
    %v455 = vld [vmem:[#allocation4 + $0x4] sm:$0xf]
    %v456 = vld [vmem:[#allocation4 + $0x8] sm:$0xf]
    %v457 = vld [vmem:[#allocation4 + $0xc] sm:$0xf]
    %v458 = vld [vmem:[#allocation4 + $0x10] sm:$0xf]
    %v459 = vld [vmem:[#allocation4 + $0x14] sm:$0xf]
    %v460 = vld [vmem:[#allocation4 + $0x18] sm:$0xf]
    %v461 = vld [vmem:[#allocation4 + $0x1c] sm:$0xf]
    %v462 = vld [vmem:[#allocation4 + $0x20] sm:$0xf]
    %v463 = vld [vmem:[#allocation4 + $0x24] sm:$0xf]
    %v464 = vld [vmem:[#allocation4 + $0x28] sm:$0xf]
    %v465 = vld [vmem:[#allocation4 + $0x2c] sm:$0xf]
    %v466 = vld [vmem:[#allocation4 + $0x30] sm:$0xf]
    %v467 = vld [vmem:[#allocation4 + $0x34] sm:$0xf]
    %v468 = vld [vmem:[#allocation4 + $0x38] sm:$0xf]
    %v469 = vld [vmem:[#allocation4 + $0x3c] sm:$0xf]
    %v470 = vld [vmem:[#allocation4 + $0x40] sm:$0xf]
    %v471 = vld [vmem:[#allocation4 + $0x44] sm:$0xf]
    %v472 = vld [vmem:[#allocation4 + $0x48] sm:$0xf]
    %v473 = vld [vmem:[#allocation4 + $0x4c] sm:$0xf]
    %v474 = vld [vmem:[#allocation4 + $0x50] sm:$0xf]
    %v475 = vld [vmem:[#allocation4 + $0x54] sm:$0xf]
    %v476 = vld [vmem:[#allocation4 + $0x58] sm:$0xf]
    %v477 = vld [vmem:[#allocation4 + $0x5c] sm:$0xf]
    %v478 = vld [vmem:[#allocation4 + $0x60] sm:$0xf]
    %v479 = vld [vmem:[#allocation4 + $0x64] sm:$0xf]
    %v480 = vld [vmem:[#allocation4 + $0x68] sm:$0xf]
    %v481 = vld [vmem:[#allocation4 + $0x6c] sm:$0xf]
    %v482 = vld [vmem:[#allocation4 + $0x70] sm:$0xf]
    %v483 = vld [vmem:[#allocation4 + $0x74] sm:$0xf]
    %v484 = vld [vmem:[#allocation4 + $0x78] sm:$0xf]
    %v485 = vld [vmem:[#allocation4 + $0x7c] sm:$0xf]
    %v486 = vld [vmem:[%s8] sm:$0x1]
    %v488 = vlaneseq
    %v489 = vshrl.u32 %v488, 7
    %v490 = vsub.s32 0, %v489
    %v491 = vrot.slane %v486, %v490
    %v525 = vunpack.c.l.b16 %v454
    %v526 = vunpack.c.l.b16 %v455
    %v527 = vunpack.c.l.b16 %v456
    %v528 = vunpack.c.l.b16 %v457
    %v529 = vunpack.c.l.b16 %v458
    %v530 = vunpack.c.l.b16 %v459
    %v531 = vunpack.c.l.b16 %v460
    %v532 = vunpack.c.l.b16 %v461
    %v533 = vunpack.c.l.b16 %v462
    %v534 = vunpack.c.l.b16 %v463
    %v535 = vunpack.c.l.b16 %v464
    %v536 = vunpack.c.l.b16 %v465
    %v537 = vunpack.c.l.b16 %v466
    %v538 = vunpack.c.l.b16 %v467
    %v539 = vunpack.c.l.b16 %v468
    %v540 = vunpack.c.l.b16 %v469
    %v541 = vunpack.c.l.b16 %v470
    %v542 = vunpack.c.l.b16 %v471
    %v543 = vunpack.c.l.b16 %v472
    %v544 = vunpack.c.l.b16 %v473
    %v545 = vunpack.c.l.b16 %v474
    %v546 = vunpack.c.l.b16 %v475
    %v547 = vunpack.c.l.b16 %v476
    %v548 = vunpack.c.l.b16 %v477
    %v549 = vunpack.c.l.b16 %v478
    %v550 = vunpack.c.l.b16 %v479
    %v551 = vunpack.c.l.b16 %v480
    %v552 = vunpack.c.l.b16 %v481
    %v553 = vunpack.c.l.b16 %v482
    %v554 = vunpack.c.l.b16 %v483
    %v555 = vunpack.c.l.b16 %v484
    %v556 = vunpack.c.l.b16 %v485
    %v557 = vpack.c.b16 %v526, %v525
    %v558 = vpack.c.b16 %v528, %v527
    %v559 = vpack.c.b16 %v530, %v529
    %v560 = vpack.c.b16 %v532, %v531
    %v561 = vpack.c.b16 %v534, %v533
    %v562 = vpack.c.b16 %v536, %v535
    %v563 = vpack.c.b16 %v538, %v537
    %v564 = vpack.c.b16 %v540, %v539
    %v565 = vpack.c.b16 %v542, %v541
    %v566 = vpack.c.b16 %v544, %v543
    %v567 = vpack.c.b16 %v546, %v545
    %v568 = vpack.c.b16 %v548, %v547
    %v569 = vpack.c.b16 %v550, %v549
    %v570 = vpack.c.b16 %v552, %v551
    %v571 = vpack.c.b16 %v554, %v553
    %v572 = vpack.c.b16 %v556, %v555
    %589 = vmatprep.subr.bf16.mxu0 0
    %590 = vmatpush1.bf16.msra.mxu0 %v557
    %591 = vmatprep.subr.bf16.mxu0 0
    %592 = vmatpush1.bf16.msra.mxu0 %v558
    %593 = vmatprep.subr.bf16.mxu0 0
    %594 = vmatpush1.bf16.msra.mxu0 %v559
    %595 = vmatprep.subr.bf16.mxu0 0
    %596 = vmatpush1.bf16.msra.mxu0 %v560
    %597 = vmatprep.subr.bf16.mxu0 0
    %598 = vmatpush1.bf16.msra.mxu0 %v561
    %599 = vmatprep.subr.bf16.mxu0 0
    %600 = vmatpush1.bf16.msra.mxu0 %v562
    %601 = vmatprep.subr.bf16.mxu0 0
    %602 = vmatpush1.bf16.msra.mxu0 %v563
    %603 = vmatprep.subr.bf16.mxu0 0
    %604 = vmatpush1.bf16.msra.mxu0 %v564
    %605 = vmatprep.subr.bf16.mxu0 0
    %606 = vmatpush1.bf16.msra.mxu0 %v565
    %607 = vmatprep.subr.bf16.mxu0 0
    %608 = vmatpush1.bf16.msra.mxu0 %v566
    %609 = vmatprep.subr.bf16.mxu0 0
    %610 = vmatpush1.bf16.msra.mxu0 %v567
    %611 = vmatprep.subr.bf16.mxu0 0
    %612 = vmatpush1.bf16.msra.mxu0 %v568
    %613 = vmatprep.subr.bf16.mxu0 0
    %614 = vmatpush1.bf16.msra.mxu0 %v569
    %615 = vmatprep.subr.bf16.mxu0 0
    %616 = vmatpush1.bf16.msra.mxu0 %v570
    %617 = vmatprep.subr.bf16.mxu0 0
    %618 = vmatpush1.bf16.msra.mxu0 %v571
    %619 = vmatprep.subr.bf16.mxu0 0
    %620 = vmatpush1.bf16.msra.mxu0 %v572
    %621 = vmatprep.mubr.bf16.mxu0 %v453
    %622 = vmatmul.mubr.bf16.gmra.mrb[0].mxu0 %v452
    %v623 = vpop.f32.mrb[0].mxu0
    %v624 = vadd.f32 %v491, %v623
    %v625 = vpop.f32.mrb[0].mxu0
    %v626 = vpop.f32.mrb[0].mxu0
    %v627 = vpop.f32.mrb[0].mxu0
    %628 = vdwg.mxu0
    %v629 = vmax.f32 %v624, 0.0
    %v630 = vpack.c.bf16 %v629, %v629
    %v631 = vld [vmem:[#allocation6] sm:$0xf]
    %v632 = vld [vmem:[#allocation6 + $0x4] sm:$0xf]
    %v633 = vld [vmem:[#allocation6 + $0x8] sm:$0xf]
    %v634 = vld [vmem:[#allocation6 + $0xc] sm:$0xf]
    %v635 = vld [vmem:[#allocation6 + $0x10] sm:$0xf]
    %v636 = vld [vmem:[#allocation6 + $0x14] sm:$0xf]
    %v637 = vld [vmem:[#allocation6 + $0x18] sm:$0xf]
    %v638 = vld [vmem:[#allocation6 + $0x1c] sm:$0xf]
    %v639 = vld [vmem:[#allocation6 + $0x20] sm:$0xf]
    %v640 = vld [vmem:[#allocation6 + $0x24] sm:$0xf]
    %v641 = vld [vmem:[#allocation6 + $0x28] sm:$0xf]
    %v642 = vld [vmem:[#allocation6 + $0x2c] sm:$0xf]
    %v643 = vld [vmem:[#allocation6 + $0x30] sm:$0xf]
    %v644 = vld [vmem:[#allocation6 + $0x34] sm:$0xf]
    %v645 = vld [vmem:[#allocation6 + $0x38] sm:$0xf]
    %v646 = vld [vmem:[#allocation6 + $0x3c] sm:$0xf]
    %v647 = vld [vmem:[%s10] sm:$0x1]
    %v649 = vlaneseq
    %v650 = vshrl.u32 %v649, 7
    %v651 = vsub.s32 0, %v650
    %v652 = vrot.slane %v647, %v651
    %v670 = vunpack.c.l.b16 %v631
    %v671 = vunpack.c.l.b16 %v632
    %v672 = vunpack.c.l.b16 %v633
    %v673 = vunpack.c.l.b16 %v634
    %v674 = vunpack.c.l.b16 %v635
    %v675 = vunpack.c.l.b16 %v636
    %v676 = vunpack.c.l.b16 %v637
    %v677 = vunpack.c.l.b16 %v638
    %v678 = vunpack.c.l.b16 %v639
    %v679 = vunpack.c.l.b16 %v640
    %v680 = vunpack.c.l.b16 %v641
    %v681 = vunpack.c.l.b16 %v642
    %v682 = vunpack.c.l.b16 %v643
    %v683 = vunpack.c.l.b16 %v644
    %v684 = vunpack.c.l.b16 %v645
    %v685 = vunpack.c.l.b16 %v646
    %v686 = vpack.c.b16 %v671, %v670
    %v687 = vpack.c.b16 %v673, %v672
    %v688 = vpack.c.b16 %v675, %v674
    %v689 = vpack.c.b16 %v677, %v676
    %v690 = vpack.c.b16 %v679, %v678
    %v691 = vpack.c.b16 %v681, %v680
    %v692 = vpack.c.b16 %v683, %v682
    %v693 = vpack.c.b16 %v685, %v684
    %702 = vmatprep.subr.bf16.mxu0 0
    %703 = vmatpush1.bf16.msra.mxu0 %v686
    %704 = vmatprep.subr.bf16.mxu0 0
    %705 = vmatpush1.bf16.msra.mxu0 %v687
    %706 = vmatprep.subr.bf16.mxu0 0
    %707 = vmatpush1.bf16.msra.mxu0 %v688
    %708 = vmatprep.subr.bf16.mxu0 0
    %709 = vmatpush1.bf16.msra.mxu0 %v689
    %710 = vmatprep.subr.bf16.mxu0 0
    %711 = vmatpush1.bf16.msra.mxu0 %v690
    %712 = vmatprep.subr.bf16.mxu0 0
    %713 = vmatpush1.bf16.msra.mxu0 %v691
    %714 = vmatprep.subr.bf16.mxu0 0
    %715 = vmatpush1.bf16.msra.mxu0 %v692
    %716 = vmatprep.subr.bf16.mxu0 0
    %717 = vmatpush1.bf16.msra.mxu0 %v693
    %718 = vmatprep.subr.bf16.mxu0 0
    %719 = vmatpush1.bf16.msra.mxu0 0
    %720 = vmatprep.subr.bf16.mxu0 0
    %721 = vmatpush1.bf16.msra.mxu0 0
    %722 = vmatprep.subr.bf16.mxu0 0
    %723 = vmatpush1.bf16.msra.mxu0 0
    %724 = vmatprep.subr.bf16.mxu0 0
    %725 = vmatpush1.bf16.msra.mxu0 0
    %726 = vmatprep.subr.bf16.mxu0 0
    %727 = vmatpush1.bf16.msra.mxu0 0
    %728 = vmatprep.subr.bf16.mxu0 0
    %729 = vmatpush1.bf16.msra.mxu0 0
    %730 = vmatprep.subr.bf16.mxu0 0
    %731 = vmatpush1.bf16.msra.mxu0 0
    %732 = vmatprep.subr.bf16.mxu0 0
    %733 = vmatpush1.bf16.msra.mxu0 0
    %734 = vmatprep.mubr.bf16.mxu0 0
    %735 = vmatmul.mubr.bf16.gmra.mrb[0].mxu0 %v630
    %v736 = vpop.f32.mrb[0].mxu0
    %v737 = vadd.f32 %v652, %v736
    %v738 = vpop.f32.mrb[0].mxu0
    %v739 = vpop.f32.mrb[0].mxu0
    %v740 = vpop.f32.mrb[0].mxu0
    %741 = vdwg.mxu0
    %v742 = vmax.f32 %v737, 0.0
    %v743 = vpack.c.bf16 %v742, %v742
    %v744 = vld [vmem:[#allocation7] sm:$0xf]
    %v745 = vld [vmem:[#allocation7 + $0x4] sm:$0xf]
    %v746 = vld [vmem:[#allocation7 + $0x8] sm:$0xf]
    %v747 = vld [vmem:[#allocation7 + $0xc] sm:$0xf]
    %v748 = vld [vmem:[#allocation7 + $0x10] sm:$0xf]
    %v749 = vld [vmem:[#allocation7 + $0x14] sm:$0xf]
    %v750 = vld [vmem:[#allocation7 + $0x18] sm:$0xf]
    %v751 = vld [vmem:[#allocation7 + $0x1c] sm:$0xf]
    %v752 = vld [vmem:[#allocation7 + $0x20] sm:$0xf]
    %v753 = vld [vmem:[#allocation7 + $0x24] sm:$0xf]
    %v754 = vld [vmem:[#allocation7 + $0x28] sm:$0xf]
    %v755 = vld [vmem:[#allocation7 + $0x2c] sm:$0xf]
    %v756 = vld [vmem:[#allocation7 + $0x30] sm:$0xf]
    %v757 = vld [vmem:[#allocation7 + $0x34] sm:$0xf]
    %v758 = vld [vmem:[#allocation7 + $0x38] sm:$0xf]
    %v759 = vld [vmem:[#allocation7 + $0x3c] sm:$0xf]
    %v760 = vld [vmem:[%s12] sm:$0x1]
    %v762 = vlaneseq
    %v763 = vshrl.u32 %v762, 7
    %v764 = vsub.s32 0, %v763
    %v765 = vrot.slane %v760, %v764
    %v783 = vunpack.c.l.b16 %v744
    %v784 = vunpack.c.l.b16 %v745
    %v785 = vunpack.c.l.b16 %v746
    %v786 = vunpack.c.l.b16 %v747
    %v787 = vunpack.c.l.b16 %v748
    %v788 = vunpack.c.l.b16 %v749
    %v789 = vunpack.c.l.b16 %v750
    %v790 = vunpack.c.l.b16 %v751
    %v791 = vunpack.c.l.b16 %v752
    %v792 = vunpack.c.l.b16 %v753
    %v793 = vunpack.c.l.b16 %v754
    %v794 = vunpack.c.l.b16 %v755
    %v795 = vunpack.c.l.b16 %v756
    %v796 = vunpack.c.l.b16 %v757
    %v797 = vunpack.c.l.b16 %v758
    %v798 = vunpack.c.l.b16 %v759
    %v799 = vpack.c.b16 %v784, %v783
    %v800 = vpack.c.b16 %v786, %v785
    %v801 = vpack.c.b16 %v788, %v787
    %v802 = vpack.c.b16 %v790, %v789
    %v803 = vpack.c.b16 %v792, %v791
    %v804 = vpack.c.b16 %v794, %v793
    %v805 = vpack.c.b16 %v796, %v795
    %v806 = vpack.c.b16 %v798, %v797
    %815 = vmatprep.subr.bf16.mxu0 0
    %816 = vmatpush1.bf16.msra.mxu0 %v799
    %817 = vmatprep.subr.bf16.mxu0 0
    %818 = vmatpush1.bf16.msra.mxu0 %v800
    %819 = vmatprep.subr.bf16.mxu0 0
    %820 = vmatpush1.bf16.msra.mxu0 %v801
    %821 = vmatprep.subr.bf16.mxu0 0
    %822 = vmatpush1.bf16.msra.mxu0 %v802
    %823 = vmatprep.subr.bf16.mxu0 0
    %824 = vmatpush1.bf16.msra.mxu0 %v803
    %825 = vmatprep.subr.bf16.mxu0 0
    %826 = vmatpush1.bf16.msra.mxu0 %v804
    %827 = vmatprep.subr.bf16.mxu0 0
    %828 = vmatpush1.bf16.msra.mxu0 %v805
    %829 = vmatprep.subr.bf16.mxu0 0
    %830 = vmatpush1.bf16.msra.mxu0 %v806
    %831 = vmatprep.subr.bf16.mxu0 0
    %832 = vmatpush1.bf16.msra.mxu0 0
    %833 = vmatprep.subr.bf16.mxu0 0
    %834 = vmatpush1.bf16.msra.mxu0 0
    %835 = vmatprep.subr.bf16.mxu0 0
    %836 = vmatpush1.bf16.msra.mxu0 0
    %837 = vmatprep.subr.bf16.mxu0 0
    %838 = vmatpush1.bf16.msra.mxu0 0
    %839 = vmatprep.subr.bf16.mxu0 0
    %840 = vmatpush1.bf16.msra.mxu0 0
    %841 = vmatprep.subr.bf16.mxu0 0
    %842 = vmatpush1.bf16.msra.mxu0 0
    %843 = vmatprep.subr.bf16.mxu0 0
    %844 = vmatpush1.bf16.msra.mxu0 0
    %845 = vmatprep.subr.bf16.mxu0 0
    %846 = vmatpush1.bf16.msra.mxu0 0
    %847 = vmatprep.mubr.bf16.mxu0 0
    %848 = vmatmul.mubr.bf16.gmra.mrb[0].mxu0 %v743
    %v849 = vpop.f32.mrb[0].mxu0
    %v850 = vadd.f32 %v765, %v849
    %v851 = vpop.f32.mrb[0].mxu0
    %v852 = vpop.f32.mrb[0].mxu0
    %v853 = vpop.f32.mrb[0].mxu0
    %854 = vdwg.mxu0
    %v855 = vmax.f32 %v850, 0.0
    %v856 = vpack.c.bf16 %v855, %v855
    %v857 = vld [vmem:[#allocation9] sm:$0xf]
    %v858 = vld [vmem:[#allocation9 + $0x4] sm:$0xf]
    %v859 = vld [vmem:[#allocation9 + $0x8] sm:$0xf]
    %v860 = vld [vmem:[#allocation9 + $0xc] sm:$0xf]
    %v861 = vld [vmem:[#allocation9 + $0x10] sm:$0xf]
    %v862 = vld [vmem:[#allocation9 + $0x14] sm:$0xf]
    %v863 = vld [vmem:[#allocation9 + $0x18] sm:$0xf]
    %v864 = vld [vmem:[#allocation9 + $0x1c] sm:$0xf]
    %v865 = vld [vmem:[#allocation9 + $0x20] sm:$0xf]
    %v866 = vld [vmem:[#allocation9 + $0x24] sm:$0xf]
    %v867 = vld [vmem:[#allocation9 + $0x28] sm:$0xf]
    %v868 = vld [vmem:[#allocation9 + $0x2c] sm:$0xf]
    %v869 = vld [vmem:[#allocation9 + $0x30] sm:$0xf]
    %v870 = vld [vmem:[#allocation9 + $0x34] sm:$0xf]
    %v871 = vld [vmem:[#allocation9 + $0x38] sm:$0xf]
    %v872 = vld [vmem:[#allocation9 + $0x3c] sm:$0xf]
    %v873 = vld [vmem:[%s14] sm:$0x1]
    %v875 = vlaneseq
    %v876 = vshrl.u32 %v875, 7
    %v877 = vsub.s32 0, %v876
    %v878 = vrot.slane %v873, %v877
    %v896 = vunpack.c.l.b16 %v857
    %v897 = vunpack.c.l.b16 %v858
    %v898 = vunpack.c.l.b16 %v859
    %v899 = vunpack.c.l.b16 %v860
    %v900 = vunpack.c.l.b16 %v861
    %v901 = vunpack.c.l.b16 %v862
    %v902 = vunpack.c.l.b16 %v863
    %v903 = vunpack.c.l.b16 %v864
    %v904 = vunpack.c.l.b16 %v865
    %v905 = vunpack.c.l.b16 %v866
    %v906 = vunpack.c.l.b16 %v867
    %v907 = vunpack.c.l.b16 %v868
    %v908 = vunpack.c.l.b16 %v869
    %v909 = vunpack.c.l.b16 %v870
    %v910 = vunpack.c.l.b16 %v871
    %v911 = vunpack.c.l.b16 %v872
    %v912 = vpack.c.b16 %v897, %v896
    %v913 = vpack.c.b16 %v899, %v898
    %v914 = vpack.c.b16 %v901, %v900
    %v915 = vpack.c.b16 %v903, %v902
    %v916 = vpack.c.b16 %v905, %v904
    %v917 = vpack.c.b16 %v907, %v906
    %v918 = vpack.c.b16 %v909, %v908
    %v919 = vpack.c.b16 %v911, %v910
    %928 = vmatprep.subr.bf16.mxu0 0
    %929 = vmatpush1.bf16.msra.mxu0 %v912
    %930 = vmatprep.subr.bf16.mxu0 0
    %931 = vmatpush1.bf16.msra.mxu0 %v913
    %932 = vmatprep.subr.bf16.mxu0 0
    %933 = vmatpush1.bf16.msra.mxu0 %v914
    %934 = vmatprep.subr.bf16.mxu0 0
    %935 = vmatpush1.bf16.msra.mxu0 %v915
    %936 = vmatprep.subr.bf16.mxu0 0
    %937 = vmatpush1.bf16.msra.mxu0 %v916
    %938 = vmatprep.subr.bf16.mxu0 0
    %939 = vmatpush1.bf16.msra.mxu0 %v917
    %940 = vmatprep.subr.bf16.mxu0 0
    %941 = vmatpush1.bf16.msra.mxu0 %v918
    %942 = vmatprep.subr.bf16.mxu0 0
    %943 = vmatpush1.bf16.msra.mxu0 %v919
    %944 = vmatprep.subr.bf16.mxu0 0
    %945 = vmatpush1.bf16.msra.mxu0 0
    %946 = vmatprep.subr.bf16.mxu0 0
    %947 = vmatpush1.bf16.msra.mxu0 0
    %948 = vmatprep.subr.bf16.mxu0 0
    %949 = vmatpush1.bf16.msra.mxu0 0
    %950 = vmatprep.subr.bf16.mxu0 0
    %951 = vmatpush1.bf16.msra.mxu0 0
    %952 = vmatprep.subr.bf16.mxu0 0
    %953 = vmatpush1.bf16.msra.mxu0 0
    %954 = vmatprep.subr.bf16.mxu0 0
    %955 = vmatpush1.bf16.msra.mxu0 0
    %956 = vmatprep.subr.bf16.mxu0 0
    %957 = vmatpush1.bf16.msra.mxu0 0
    %958 = vmatprep.subr.bf16.mxu0 0
    %959 = vmatpush1.bf16.msra.mxu0 0
    %960 = vmatprep.mubr.bf16.mxu0 0
    %961 = vmatmul.mubr.bf16.gmra.mrb[0].mxu0 %v856
    %v962 = vpop.f32.mrb[0].mxu0
    %v963 = vadd.f32 %v878, %v962
    %v964 = vpop.f32.mrb[0].mxu0
    %v965 = vpop.f32.mrb[0].mxu0
    %v966 = vpop.f32.mrb[0].mxu0
    %967 = vdwg.mxu0
    %v968 = vmax.f32 %v963, 0.0
    %v969 = vpack.c.bf16 %v968, %v968
    %v970 = vld [vmem:[%s15] sm:$0xf]
    %v971 = vld [vmem:[%s15 + $0x4] sm:$0xf]
    %v972 = vld [vmem:[%s15 + $0x8] sm:$0xf]
    %v973 = vld [vmem:[%s15 + $0xc] sm:$0xf]
    %v974 = vld [vmem:[%s15 + $0x10] sm:$0xf]
    %v975 = vld [vmem:[%s15 + $0x14] sm:$0xf]
    %v976 = vld [vmem:[%s15 + $0x18] sm:$0xf]
    %v977 = vld [vmem:[%s15 + $0x1c] sm:$0xf]
    %v978 = vld [vmem:[%s15 + $0x20] sm:$0xf]
    %v979 = vld [vmem:[%s15 + $0x24] sm:$0xf]
    %v980 = vld [vmem:[%s15 + $0x28] sm:$0xf]
    %v981 = vld [vmem:[%s15 + $0x2c] sm:$0xf]
    %v982 = vld [vmem:[%s15 + $0x30] sm:$0xf]
    %v983 = vld [vmem:[%s15 + $0x34] sm:$0xf]
    %v984 = vld [vmem:[%s15 + $0x38] sm:$0xf]
    %v985 = vld [vmem:[%s15 + $0x3c] sm:$0xf]
    %v986 = vld [vmem:[%s16] sm:$0x1]
    %v988 = vlaneseq
    %v989 = vshrl.u32 %v988, 7
    %v990 = vsub.s32 0, %v989
    %v991 = vrot.slane %v986, %v990
    %v1009 = vunpack.c.l.b16 %v970
    %v1010 = vunpack.c.l.b16 %v971
    %v1011 = vunpack.c.l.b16 %v972
    %v1012 = vunpack.c.l.b16 %v973
    %v1013 = vunpack.c.l.b16 %v974
    %v1014 = vunpack.c.l.b16 %v975
    %v1015 = vunpack.c.l.b16 %v976
    %v1016 = vunpack.c.l.b16 %v977
    %v1017 = vunpack.c.l.b16 %v978
    %v1018 = vunpack.c.l.b16 %v979
    %v1019 = vunpack.c.l.b16 %v980
    %v1020 = vunpack.c.l.b16 %v981
    %v1021 = vunpack.c.l.b16 %v982
    %v1022 = vunpack.c.l.b16 %v983
    %v1023 = vunpack.c.l.b16 %v984
    %v1024 = vunpack.c.l.b16 %v985
    %v1025 = vpack.c.b16 %v1010, %v1009
    %v1026 = vpack.c.b16 %v1012, %v1011
    %v1027 = vpack.c.b16 %v1014, %v1013
    %v1028 = vpack.c.b16 %v1016, %v1015
    %v1029 = vpack.c.b16 %v1018, %v1017
    %v1030 = vpack.c.b16 %v1020, %v1019
    %v1031 = vpack.c.b16 %v1022, %v1021
    %v1032 = vpack.c.b16 %v1024, %v1023
    %1041 = vmatprep.subr.bf16.mxu0 0
    %1042 = vmatpush1.bf16.msra.mxu0 %v1025
    %1043 = vmatprep.subr.bf16.mxu0 0
    %1044 = vmatpush1.bf16.msra.mxu0 %v1026
    %1045 = vmatprep.subr.bf16.mxu0 0
    %1046 = vmatpush1.bf16.msra.mxu0 %v1027
    %1047 = vmatprep.subr.bf16.mxu0 0
    %1048 = vmatpush1.bf16.msra.mxu0 %v1028
    %1049 = vmatprep.subr.bf16.mxu0 0
    %1050 = vmatpush1.bf16.msra.mxu0 %v1029
    %1051 = vmatprep.subr.bf16.mxu0 0
    %1052 = vmatpush1.bf16.msra.mxu0 %v1030
    %1053 = vmatprep.subr.bf16.mxu0 0
    %1054 = vmatpush1.bf16.msra.mxu0 %v1031
    %1055 = vmatprep.subr.bf16.mxu0 0
    %1056 = vmatpush1.bf16.msra.mxu0 %v1032
    %1057 = vmatprep.subr.bf16.mxu0 0
    %1058 = vmatpush1.bf16.msra.mxu0 0
    %1059 = vmatprep.subr.bf16.mxu0 0
    %1060 = vmatpush1.bf16.msra.mxu0 0
    %1061 = vmatprep.subr.bf16.mxu0 0
    %1062 = vmatpush1.bf16.msra.mxu0 0
    %1063 = vmatprep.subr.bf16.mxu0 0
    %1064 = vmatpush1.bf16.msra.mxu0 0
    %1065 = vmatprep.subr.bf16.mxu0 0
    %1066 = vmatpush1.bf16.msra.mxu0 0
    %1067 = vmatprep.subr.bf16.mxu0 0
    %1068 = vmatpush1.bf16.msra.mxu0 0
    %1069 = vmatprep.subr.bf16.mxu0 0
    %1070 = vmatpush1.bf16.msra.mxu0 0
    %1071 = vmatprep.subr.bf16.mxu0 0
    %1072 = vmatpush1.bf16.msra.mxu0 0
    %1073 = vmatprep.mubr.bf16.mxu0 0
    %1074 = vmatmul.mubr.bf16.gmra.mrb[0].mxu0 %v969
    %v1075 = vpop.f32.mrb[0].mxu0
    %v1076 = vadd.f32 %v991, %v1075
    %v1077 = vpop.f32.mrb[0].mxu0
    %v1078 = vpop.f32.mrb[0].mxu0
    %v1079 = vpop.f32.mrb[0].mxu0
    %1080 = vdwg.mxu0
    %v1081 = vsub.f32 0.0, %v1076
    %v1082 = vmul.f32 %v1081, 1.442695
    %v1083 = vpow.pop %v1082
    %v1084 = vadd.f32 %v1083, 1.0
    %v1085 = vrcp.pop %v1084
    %v1086 = vmul.f32 1.0, %v1085
    %1087 = vst.msk [vmem:[%s17] sm:$0xff] %vm142, %v1086
    // Predicated region
    $region90: #{_forward_impl.1} parent=1 // pred_check
      _
    $region91: #{_forward_impl.1} parent=1 // pred_check_branch
      %1089 = sbr.rel (0) target = $region93
    $region92: #{_forward_impl.1} parent=1 // pred_region
      _
    $region93: #{_forward_impl.1} parent=1 // pred_fallthru
      _
    // Predicated region
    $region94: #{_forward_impl.1} parent=1 // pred_check
      _
    $region95: #{_forward_impl.1} parent=1 // pred_check_branch
      %1091 = sbr.rel (0) target = $region97
    $region96: #{_forward_impl.1} parent=1 // pred_region
      _
    $region97: #{_forward_impl.1} parent=1 // pred_fallthru
      _
    %1092 = vsyncpa [#allocation3], 1
    %1093 = vsyncpa [#allocation5], 1
    %1094 = vsyncpa [#allocation8], 1

</llo_original>
